<compile_context>
chip_gen: v6e
topology: v6e:2x2x1
jax: 0.10.0
libtpu: 0.0.40
codegen_flags: <defaults>
</compile_context>

<pallas_src>
from functools import partial

import jax
import jax.numpy as jnp
from jax.experimental import pallas as pl
from jax.experimental.pallas import tpu as pltpu


def _round_up(n: int, m: int) -> int:
    return (n + m - 1) // m * m


def potential_kernel(x_ref, m_ref, c_ref, o_ref, *, lane_dense: bool):
    """x_ref: VMEM (tb, D)   input tile (f32 or bf16)
       m_ref: VMEM (D, D)    M = sum_p 0.5*scale*w_p * W_p @ W_p^T (resident)
       c_ref: VMEM (1, D)    c = sum_p scale*w_p * b_p (f32, resident)
       o_ref: VMEM (1, 1, tb) lane-dense row  |  (tb, 1) column (fallback)
    """
    x = x_ref[...]                                                   # native dtype -> MXU
    z = jnp.dot(x, m_ref[...], preferred_element_type=jnp.float32)  # (tb, D) f32
    # per-row quadratic + linear:  out_t = sum_d x[t, d] * (z[t, d] + c[d])
    p = x * (z + c_ref[...])                                         # f32 (x promoted on the VPU)
    if lane_dense:
        # aligned 2-D transpose (XLU) + sublane reduce -> lane-dense (1, tb) row
        row = jnp.sum(p.T, axis=0, keepdims=True)
        o_ref[...] = row[None].astype(o_ref.dtype)                   # (1, 1, tb)
    else:
        o_ref[...] = jnp.sum(p, axis=-1, keepdims=True).astype(o_ref.dtype)  # (tb, 1)


def potential_forward(x, W, b, weights, scale, *, tb_max=1024):
    """x: [B, D], W: [P, D, D], b: [P, D, 1], weights: [P], scale: scalar >= 0."""
    B, D = x.shape
    out_dtype = x.dtype

    # ---- host-side algebraic folding (scale / weights are non-negative per the
    # torch asserts; the fold itself is sign-agnostic).
    sw = jnp.asarray(scale, jnp.float32) * jnp.asarray(weights, jnp.float32)   # (P,)
    W32 = jnp.asarray(W, jnp.float32)
    M = jnp.einsum("pij,pkj->ik", W32 * (0.5 * sw)[:, None, None], W32,
                   precision=jax.lax.Precision.HIGHEST)                        # (D, D)
    c = jnp.sum(sw[:, None, None] * jnp.asarray(b, jnp.float32), axis=0).reshape(1, D)
    # match the MXU operand dtype to x (bf16 x -> bf16 M: native MXU rate).
    m_op = M.astype(jnp.bfloat16) if x.dtype == jnp.bfloat16 else M

    # ---- tile selection: fewest tiles of <= tb_max rows, rounded up to the
    # sublane multiple (16 for packed bf16, 8 otherwise).  Large batches give
    # ceil(B / tb_max) >= 2 parallel grid steps (two v7x TensorCores) while each
    # step stays big enough to amortize the ~0.35 us per-step overhead.
    sub = 16 if x.dtype == jnp.bfloat16 else 8
    n_tiles = max(1, pl.cdiv(_round_up(B, sub), tb_max))
    tb = _round_up(pl.cdiv(B, n_tiles), sub)
    b_total = n_tiles * tb
    if b_total != B:
        x = jnp.pad(x, ((0, b_total - B), (0, 0)))   # zero rows contribute exactly 0

    # ---- VMEM guard against the smallest scoped-VMEM default (v5e: 16 MiB).
    vmem_bytes = (2 * tb * D * x.dtype.itemsize        # double-buffered x tiles
                  + 2 * D * D * m_op.dtype.itemsize    # resident M (double-buffered)
                  + 2 * D * 4                          # c
                  + 2 * tb * out_dtype.itemsize        # out tiles
                  + 3 * tb * D * 4)                    # z / p / p.T intermediates
    assert vmem_bytes < 14 * 1024 * 1024, (
        "tile does not fit the v5e scoped-VMEM default; lower tb_max")
    # TODO(synk): add an 'arbitrary' K-tiling grid axis + f32 accumulator scratch
    # if D ever grows enough that the resident (D, D) block itself matters.

    lane_dense = (D % 128 == 0) and (tb % 128 == 0)
    if lane_dense:
        out_shape = jax.ShapeDtypeStruct((n_tiles, 1, tb), out_dtype)
        out_spec = pl.BlockSpec((1, 1, tb), lambda i: (i, 0, 0))
    else:
        out_shape = jax.ShapeDtypeStruct((b_total, 1), out_dtype)
        out_spec = pl.BlockSpec((tb, 1), lambda i: (i, 0))

    cost = pl.CostEstimate(
        flops=2 * b_total * D * D + 4 * b_total * D,
        transcendentals=0,
        bytes_accessed=(b_total * D * x.dtype.itemsize + D * D * m_op.dtype.itemsize
                        + D * 4 + b_total * out_dtype.itemsize),
    )

    out = pl.pallas_call(
        partial(potential_kernel, lane_dense=lane_dense),
        out_shape=out_shape,
        grid_spec=pl.GridSpec(
            grid=(n_tiles,),
            in_specs=[
                pl.BlockSpec((tb, D), lambda i: (i, 0)),    # x tile (streams)
                pl.BlockSpec((D, D), lambda i: (0, 0)),     # M (resident)
                pl.BlockSpec((1, D), lambda i: (0, 0)),     # c (resident)
            ],
            out_specs=out_spec,
        ),
        compiler_params=pltpu.CompilerParams(
            dimension_semantics=("parallel",)),
        cost_estimate=cost,
    )(x, m_op, c)

    if lane_dense:
        return out.reshape(b_total)[:B].reshape(B, 1)
    return out[:B]


def potential_reference(x, W, b, weights, scale):
    """Pure-JAX reference mirroring the torch composition."""
    hi = jax.lax.Precision.HIGHEST
    out = 0.0
    for p in range(W.shape[0]):
        y = jnp.dot(x, W[p], precision=hi)
        v = 0.5 * jnp.sum(y * y, axis=-1, keepdims=True) + jnp.dot(x, b[p], precision=hi)
        out = out + weights[p] * v
    return scale * out


if __name__ == "__main__":
    key = jax.random.PRNGKey(0)
    D, P = 128, 2                 # potential.dim, number of summed potentials
    k_x, k_w, k_b = jax.random.split(key, 3)

    W = 0.1 * jax.random.normal(k_w, (P, D, D), jnp.float32)
    b = 0.1 * jax.random.normal(k_b, (P, D, 1), jnp.float32)
    weights = [1.0, 1.0]          # WeightedSumPotential weights (from __add__)
    scale = 0.7                   # ScaledPotential scale
    w_arr = jnp.asarray(weights, jnp.float32)

    # case 1: aligned batch -> lane-dense output path (the optimized layout).
    B1 = 256
    x1 = jax.random.normal(k_x, (B1, D), jnp.float32)
    out1 = jax.block_until_ready(potential_forward(x1, W, b, weights, scale))
    ref1 = potential_reference(x1, W, b, w_arr, scale)
    assert out1.shape == (B1, 1)
    assert jnp.allclose(out1, ref1, rtol=1e-5, atol=1e-4), (
        float(jnp.max(jnp.abs(out1 - ref1))))

    # case 2: unaligned batch -> zero-padding + column-store fallback path.
    B2 = 100
    x2 = x1[:B2]
    out2 = jax.block_until_ready(potential_forward(x2, W, b, weights, scale))
    ref2 = potential_reference(x2, W, b, w_arr, scale)
    assert out2.shape == (B2, 1)
    assert jnp.allclose(out2, ref2, rtol=1e-5, atol=1e-4), (
        float(jnp.max(jnp.abs(out2 - ref2))))

    print("KERNEL_OK")
</pallas_src>

<mosaic_0001>
module attributes {stable_mosaic.version = 11 : i64} {
  func.func @potential_kernel(%arg0: i32, %arg1: memref<256x128xf32, #tpu.memory_space<vmem>>, %arg2: memref<128x128xf32, #tpu.memory_space<vmem>>, %arg3: memref<1x128xf32, #tpu.memory_space<vmem>>, %arg4: memref<1x1x256xf32, #tpu.memory_space<vmem>>) attributes {dimension_semantics = [#tpu.dimension_semantics<parallel>], iteration_bounds = array<i64: 1>, scalar_prefetch = 0 : i64, scratch_operands = 0 : i64, tpu.core_type = #tpu.core_type<tc>, window_params = [{transform_indices = @transform_0, window_bounds = array<i64: 256, 128>}, {pipeline_mode = #tpu.pipeline_mode<synchronous>, transform_indices = @transform_1, window_bounds = array<i64: 128, 128>}, {pipeline_mode = #tpu.pipeline_mode<synchronous>, transform_indices = @transform_2, window_bounds = array<i64: 1, 128>}, {transform_indices = @transform_3, window_bounds = array<i64: 1, 1, 256>}]} {
    %c0 = arith.constant 0 : index
    %c0_0 = arith.constant 0 : index
    %0 = vector.load %arg1[%c0, %c0_0] : memref<256x128xf32, #tpu.memory_space<vmem>>, vector<256x128xf32>
    %c0_1 = arith.constant 0 : index
    %c0_2 = arith.constant 0 : index
    %1 = vector.load %arg2[%c0_1, %c0_2] : memref<128x128xf32, #tpu.memory_space<vmem>>, vector<128x128xf32>
    %cst = arith.constant dense<0.000000e+00> : vector<256x128xf32>
    %2 = tpu.matmul %0, %1, %cst {dimension_numbers = #tpu.dot_dimension_numbers<[1], [0], [0], [1], [0, 0, 1, 1], [], []>} : vector<256x128xf32>, vector<128x128xf32>, vector<256x128xf32> -> vector<256x128xf32>
    %c0_3 = arith.constant 0 : index
    %c0_4 = arith.constant 0 : index
    %3 = vector.load %arg3[%c0_3, %c0_4] : memref<1x128xf32, #tpu.memory_space<vmem>>, vector<1x128xf32>
    %4 = vector.broadcast %3 : vector<1x128xf32> to vector<256x128xf32>
    %5 = arith.addf %2, %4 : vector<256x128xf32>
    %6 = arith.mulf %0, %5 : vector<256x128xf32>
    %7 = tpu.transpose %6, [1, 0] : vector<256x128xf32> -> vector<128x256xf32>
    %cst_5 = arith.constant dense<0.000000e+00> : vector<256xf32>
    %8 = vector.multi_reduction <add>, %7, %cst_5 [0] : vector<128x256xf32> to vector<256xf32>
    %9 = vector.shape_cast %8 : vector<256xf32> to vector<1x256xf32>
    %10 = vector.shape_cast %9 : vector<1x256xf32> to vector<1x1x256xf32>
    %c0_6 = arith.constant 0 : index
    %c0_7 = arith.constant 0 : index
    %c0_8 = arith.constant 0 : index
    %11 = vector.load %arg4[%c0_6, %c0_7, %c0_8] : memref<1x1x256xf32, #tpu.memory_space<vmem>>, vector<1x1x256xf32>
    tpu.vector_store %arg4[%c0_6, %c0_7, %c0_8], %10 {strides = array<i32>} : memref<1x1x256xf32, #tpu.memory_space<vmem>>, vector<1x1x256xf32>,
    return
  }
  func.func @transform_0(%arg0: i32) -> (i32, i32) {
    %c0_i32 = arith.constant 0 : i32
    %c0_i32_0 = arith.constant 0 : i32
    return %arg0, %c0_i32 : i32, i32
  }
  func.func @transform_1(%arg0: i32) -> (i32, i32) {
    %c0_i32 = arith.constant 0 : i32
    %c0_i32_0 = arith.constant 0 : i32
    %c0_i32_1 = arith.constant 0 : i32
    return %c0_i32, %c0_i32_0 : i32, i32
  }
  func.func @transform_2(%arg0: i32) -> (i32, i32) {
    %c0_i32 = arith.constant 0 : i32
    %c0_i32_0 = arith.constant 0 : i32
    %c0_i32_1 = arith.constant 0 : i32
    return %c0_i32, %c0_i32_0 : i32, i32
  }
  func.func @transform_3(%arg0: i32) -> (i32, i32, i32) {
    %c0_i32 = arith.constant 0 : i32
    %c0_i32_0 = arith.constant 0 : i32
    %c0_i32_1 = arith.constant 0 : i32
    return %arg0, %c0_i32, %c0_i32_0 : i32, i32, i32
  }
}

</mosaic_0001>

<llo_original>
// kernel: tpu_custom_call.1
$region0: #{tpu_custom_call.1}
  #allocation0 [shape = 'u32[]', space=smem, size = 0x4, offset = 0x4, fixed_abs, tag = 'smem constant byte address 0x4 - core index']
  #allocation1 [shape = 'u32[144,128]{1,0:T(1,128)}', space=vmem, size = 0x12000, scoped, tag = 'internal scratch']
  %s0 = inlined_call_operand.hbm [shape: f32[256,128], index: 0, kind: input, shape index: {}]
  %s1 = inlined_call_operand.hbm [shape: f32[128,128], index: 1, kind: input, shape index: {}]
  %s2 = inlined_call_operand.vmem [shape: f32[1,128], index: 2, kind: input, shape index: {}]
  %s3 = inlined_call_operand.hbm [shape: f32[1,1,256], index: 3, kind: output, shape index: {}]
  %s4 = sld [smem:[#allocation0]]
  $region30: #{tpu_custom_call.1} parent=0
    _
  %s6 = ssub.s32 1, %s4
  %s7 = scalar_select 0, %s6, %s4
  $region1: #{tpu_custom_call.1} parent=0
    #allocation2 [shape = 'u8[131072]{0}', space=vmem, size = 0x20000, scoped, tag = 'input window, operand 0, single buffered']
    #allocation3 [shape = 's32[1]{0}', space=sflag, size = 0x4, scoped, tag = 'scoped memory for tpu_custom_call.1']
    #allocation4 [shape = 's32[1]{0}', space=sflag, size = 0x4, scoped, tag = 'scoped memory for tpu_custom_call.1']
    #allocation5 [shape = 'u8[65536]{0}', space=vmem, size = 0x10000, scoped, tag = 'input window, operand 1, single buffered']
    #allocation6 [shape = 's32[1]{0}', space=sflag, size = 0x4, scoped, tag = 'scoped memory for tpu_custom_call.1']
    #allocation7 [shape = 'u8[1024]{0}', space=vmem, size = 0x400, scoped, tag = 'output window, operand 0, single buffered']
    %8 = vsyncpa [#allocation3], 0
    %9 = vsyncpa [#allocation6], 0
    %10 = vsyncpa [#allocation4], 0
    // Predicated region
    $region2: #{tpu_custom_call.1} parent=1 // pred_check
      _
    $region3: #{tpu_custom_call.1} parent=1 // pred_check_branch
      %12 = sbr.rel (0) target = $region5
    $region4: #{tpu_custom_call.1} parent=1 // pred_region
      %s14 = ssub.s32 4096, 4096
      %15 = vsyncadd [#allocation3], %s14
      %s16 = sshll.u32 [#allocation2], 4
      %s17 = int_to_ptr.vmem [resolvable:$true] %s16
      %22 = dma.hbm_to_vmem [thread:$0]  %s0, 4096, %s17, [#allocation3], 128, 128, 8
    $region5: #{tpu_custom_call.1} parent=1 // pred_fallthru
      _
    // Predicated region
    $region6: #{tpu_custom_call.1} parent=1 // pred_check
      _
    $region7: #{tpu_custom_call.1} parent=1 // pred_check_branch
      %24 = sbr.rel (0) target = $region9
    $region8: #{tpu_custom_call.1} parent=1 // pred_region
      %s26 = ssub.s32 2048, 2048
      %27 = vsyncadd [#allocation6], %s26
      %s28 = sshll.u32 [#allocation5], 4
      %s29 = int_to_ptr.vmem [resolvable:$true] %s28
      %34 = dma.hbm_to_vmem [thread:$0]  %s1, 2048, %s29, [#allocation6], 128, 128, 8
    $region9: #{tpu_custom_call.1} parent=1 // pred_fallthru
      _
    // Predicated region
    $region10: #{tpu_custom_call.1} parent=1 // pred_check
      _
    $region11: #{tpu_custom_call.1} parent=1 // pred_check_branch
      %36 = sbr.rel (0) target = $region13
    $region12: #{tpu_custom_call.1} parent=1 // pred_region
      _
    $region13: #{tpu_custom_call.1} parent=1 // pred_fallthru
      _
    // Predicated region
    $region14: #{tpu_custom_call.1} parent=1 // pred_check
      _
    $region15: #{tpu_custom_call.1} parent=1 // pred_check_branch
      %38 = sbr.rel (0) target = $region17
    $region16: #{tpu_custom_call.1} parent=1 // pred_region
      %39 = dma.done [#allocation3], 4096
    $region17: #{tpu_custom_call.1} parent=1 // pred_fallthru
      _
    // Predicated region
    $region18: #{tpu_custom_call.1} parent=1 // pred_check
      _
    $region19: #{tpu_custom_call.1} parent=1 // pred_check_branch
      %41 = sbr.rel (0) target = $region21
    $region20: #{tpu_custom_call.1} parent=1 // pred_region
      %42 = dma.done [#allocation6], 2048
    $region21: #{tpu_custom_call.1} parent=1 // pred_fallthru
      _
    %v43 = vld [vmem:[#allocation2] sm:$0xff]
    %v44 = vld [vmem:[#allocation2 + $0x8] sm:$0xff]
    %v45 = vld [vmem:[#allocation2 + $0x10] sm:$0xff]
    %v46 = vld [vmem:[#allocation2 + $0x18] sm:$0xff]
    %v47 = vld [vmem:[#allocation2 + $0x20] sm:$0xff]
    %v48 = vld [vmem:[#allocation2 + $0x28] sm:$0xff]
    %v49 = vld [vmem:[#allocation2 + $0x30] sm:$0xff]
    %v50 = vld [vmem:[#allocation2 + $0x38] sm:$0xff]
    %v51 = vld [vmem:[#allocation2 + $0x40] sm:$0xff]
    %v52 = vld [vmem:[#allocation2 + $0x48] sm:$0xff]
    %v53 = vld [vmem:[#allocation2 + $0x50] sm:$0xff]
    %v54 = vld [vmem:[#allocation2 + $0x58] sm:$0xff]
    %v55 = vld [vmem:[#allocation2 + $0x60] sm:$0xff]
    %v56 = vld [vmem:[#allocation2 + $0x68] sm:$0xff]
    %v57 = vld [vmem:[#allocation2 + $0x70] sm:$0xff]
    %v58 = vld [vmem:[#allocation2 + $0x78] sm:$0xff]
    %v59 = vld [vmem:[#allocation2 + $0x80] sm:$0xff]
    %v60 = vld [vmem:[#allocation2 + $0x88] sm:$0xff]
    %v61 = vld [vmem:[#allocation2 + $0x90] sm:$0xff]
    %v62 = vld [vmem:[#allocation2 + $0x98] sm:$0xff]
    %v63 = vld [vmem:[#allocation2 + $0xa0] sm:$0xff]
    %v64 = vld [vmem:[#allocation2 + $0xa8] sm:$0xff]
    %v65 = vld [vmem:[#allocation2 + $0xb0] sm:$0xff]
    %v66 = vld [vmem:[#allocation2 + $0xb8] sm:$0xff]
    %v67 = vld [vmem:[#allocation2 + $0xc0] sm:$0xff]
    %v68 = vld [vmem:[#allocation2 + $0xc8] sm:$0xff]
    %v69 = vld [vmem:[#allocation2 + $0xd0] sm:$0xff]
    %v70 = vld [vmem:[#allocation2 + $0xd8] sm:$0xff]
    %v71 = vld [vmem:[#allocation2 + $0xe0] sm:$0xff]
    %v72 = vld [vmem:[#allocation2 + $0xe8] sm:$0xff]
    %v73 = vld [vmem:[#allocation2 + $0xf0] sm:$0xff]
    %v74 = vld [vmem:[#allocation2 + $0xf8] sm:$0xff]
    %v75 = vld [vmem:[#allocation5] sm:$0xff]
    %v76 = vld [vmem:[#allocation5 + $0x8] sm:$0xff]
    %v77 = vld [vmem:[#allocation5 + $0x10] sm:$0xff]
    %v78 = vld [vmem:[#allocation5 + $0x18] sm:$0xff]
    %v79 = vld [vmem:[#allocation5 + $0x20] sm:$0xff]
    %v80 = vld [vmem:[#allocation5 + $0x28] sm:$0xff]
    %v81 = vld [vmem:[#allocation5 + $0x30] sm:$0xff]
    %v82 = vld [vmem:[#allocation5 + $0x38] sm:$0xff]
    %v83 = vld [vmem:[#allocation5 + $0x40] sm:$0xff]
    %v84 = vld [vmem:[#allocation5 + $0x48] sm:$0xff]
    %v85 = vld [vmem:[#allocation5 + $0x50] sm:$0xff]
    %v86 = vld [vmem:[#allocation5 + $0x58] sm:$0xff]
    %v87 = vld [vmem:[#allocation5 + $0x60] sm:$0xff]
    %v88 = vld [vmem:[#allocation5 + $0x68] sm:$0xff]
    %v89 = vld [vmem:[#allocation5 + $0x70] sm:$0xff]
    %v90 = vld [vmem:[#allocation5 + $0x78] sm:$0xff]
    %v91 = vld [vmem:[%s2] sm:$0x1]
    %v93 = vlaneseq
    %v94 = vshrl.u32 %v93, 7
    %v95 = vsub.s32 0, %v94
    %v96 = vrot.slane %v91, %v95
    %98 = vmatprep.subr.mxu0 0.0
    %99 = vmatpush1.msra.mxu0 %v90
    %100 = vmatprep.subr.mxu0 0.0
    %101 = vmatpush1.msra.mxu0 %v89
    %102 = vmatprep.subr.mxu0 0.0
    %103 = vmatpush1.msra.mxu0 %v88
    %104 = vmatprep.subr.mxu0 0.0
    %105 = vmatpush1.msra.mxu0 %v87
    %106 = vmatprep.subr.mxu0 0.0
    %107 = vmatpush1.msra.mxu0 %v86
    %108 = vmatprep.subr.mxu0 0.0
    %109 = vmatpush1.msra.mxu0 %v85
    %110 = vmatprep.subr.mxu0 0.0
    %111 = vmatpush1.msra.mxu0 %v84
    %112 = vmatprep.subr.mxu0 0.0
    %113 = vmatpush1.msra.mxu0 %v83
    %114 = vmatprep.subr.mxu0 0.0
    %115 = vmatpush1.msra.mxu0 %v82
    %116 = vmatprep.subr.mxu0 0.0
    %117 = vmatpush1.msra.mxu0 %v81
    %118 = vmatprep.subr.mxu0 0.0
    %119 = vmatpush1.msra.mxu0 %v80
    %120 = vmatprep.subr.mxu0 0.0
    %121 = vmatpush1.msra.mxu0 %v79
    %122 = vmatprep.subr.mxu0 0.0
    %123 = vmatpush1.msra.mxu0 %v78
    %124 = vmatprep.subr.mxu0 0.0
    %125 = vmatpush1.msra.mxu0 %v77
    %126 = vmatprep.subr.mxu0 0.0
    %127 = vmatpush1.msra.mxu0 %v76
    %128 = vmatprep.subr.mxu0 0.0
    %129 = vmatpush1.msra.mxu0 %v75
    %130 = vmatprep.subr.mxu0 0.0
    %131 = vmatpush2.msra.mxu0 0.0
    %132 = vmatprep.subr.mxu0 0.0
    %133 = vmatpush2.msra.mxu0 0.0
    %134 = vmatprep.subr.mxu0 0.0
    %135 = vmatpush2.msra.mxu0 0.0
    %136 = vmatprep.subr.mxu0 0.0
    %137 = vmatpush2.msra.mxu0 0.0
    %138 = vmatprep.subr.mxu0 0.0
    %139 = vmatpush2.msra.mxu0 0.0
    %140 = vmatprep.subr.mxu0 0.0
    %141 = vmatpush2.msra.mxu0 0.0
    %142 = vmatprep.subr.mxu0 0.0
    %143 = vmatpush2.msra.mxu0 0.0
    %144 = vmatprep.subr.mxu0 0.0
    %145 = vmatpush2.msra.mxu0 0.0
    %146 = vmatprep.subr.mxu0 0.0
    %147 = vmatpush2.msra.mxu0 0.0
    %148 = vmatprep.subr.mxu0 0.0
    %149 = vmatpush2.msra.mxu0 0.0
    %150 = vmatprep.subr.mxu0 0.0
    %151 = vmatpush2.msra.mxu0 0.0
    %152 = vmatprep.subr.mxu0 0.0
    %153 = vmatpush2.msra.mxu0 0.0
    %154 = vmatprep.subr.mxu0 0.0
    %155 = vmatpush2.msra.mxu0 0.0
    %156 = vmatprep.subr.mxu0 0.0
    %157 = vmatpush2.msra.mxu0 0.0
    %158 = vmatprep.subr.mxu0 0.0
    %159 = vmatpush2.msra.mxu0 0.0
    %160 = vmatprep.subr.mxu0 0.0
    %161 = vmatpush2.msra.mxu0 0.0
    %162 = vmatprep.mubr.f32.mxu0 0.0
    %163 = vmatmul.mubr.f32.gmra.mxu0 %v43
    %v164 = vpop.f32.mrf.mxu0
    %v165 = vadd.f32 %v96, %v164
    %v166 = vpop.f32.mrf.mxu0
    %167 = vmatprep.mubr.f32.mxu0 0.0
    %168 = vmatmul.mubr.f32.gmra.mxu0 %v44
    %v169 = vpop.f32.mrf.mxu0
    %v170 = vadd.f32 %v96, %v169
    %v171 = vpop.f32.mrf.mxu0
    %172 = vmatprep.mubr.f32.mxu0 0.0
    %173 = vmatmul.mubr.f32.gmra.mxu0 %v45
    %v174 = vpop.f32.mrf.mxu0
    %v175 = vadd.f32 %v96, %v174
    %v176 = vpop.f32.mrf.mxu0
    %177 = vmatprep.mubr.f32.mxu0 0.0
    %178 = vmatmul.mubr.f32.gmra.mxu0 %v46
    %v179 = vpop.f32.mrf.mxu0
    %v180 = vadd.f32 %v96, %v179
    %v181 = vpop.f32.mrf.mxu0
    %182 = vmatprep.mubr.f32.mxu0 0.0
    %183 = vmatmul.mubr.f32.gmra.mxu0 %v47
    %v184 = vpop.f32.mrf.mxu0
    %v185 = vadd.f32 %v96, %v184
    %v186 = vpop.f32.mrf.mxu0
    %187 = vmatprep.mubr.f32.mxu0 0.0
    %188 = vmatmul.mubr.f32.gmra.mxu0 %v48
    %v189 = vpop.f32.mrf.mxu0
    %v190 = vadd.f32 %v96, %v189
    %v191 = vpop.f32.mrf.mxu0
    %192 = vmatprep.mubr.f32.mxu0 0.0
    %193 = vmatmul.mubr.f32.gmra.mxu0 %v49
    %v194 = vpop.f32.mrf.mxu0
    %v195 = vadd.f32 %v96, %v194
    %v196 = vpop.f32.mrf.mxu0
    %197 = vmatprep.mubr.f32.mxu0 0.0
    %198 = vmatmul.mubr.f32.gmra.mxu0 %v50
    %v199 = vpop.f32.mrf.mxu0
    %v200 = vadd.f32 %v96, %v199
    %v201 = vpop.f32.mrf.mxu0
    %202 = vmatprep.mubr.f32.mxu0 0.0
    %203 = vmatmul.mubr.f32.gmra.mxu0 %v51
    %v204 = vpop.f32.mrf.mxu0
    %v205 = vadd.f32 %v96, %v204
    %v206 = vpop.f32.mrf.mxu0
    %207 = vmatprep.mubr.f32.mxu0 0.0
    %208 = vmatmul.mubr.f32.gmra.mxu0 %v52
    %v209 = vpop.f32.mrf.mxu0
    %v210 = vadd.f32 %v96, %v209
    %v211 = vpop.f32.mrf.mxu0
    %212 = vmatprep.mubr.f32.mxu0 0.0
    %213 = vmatmul.mubr.f32.gmra.mxu0 %v53
    %v214 = vpop.f32.mrf.mxu0
    %v215 = vadd.f32 %v96, %v214
    %v216 = vpop.f32.mrf.mxu0
    %217 = vmatprep.mubr.f32.mxu0 0.0
    %218 = vmatmul.mubr.f32.gmra.mxu0 %v54
    %v219 = vpop.f32.mrf.mxu0
    %v220 = vadd.f32 %v96, %v219
    %v221 = vpop.f32.mrf.mxu0
    %222 = vmatprep.mubr.f32.mxu0 0.0
    %223 = vmatmul.mubr.f32.gmra.mxu0 %v55
    %v224 = vpop.f32.mrf.mxu0
    %v225 = vadd.f32 %v96, %v224
    %v226 = vpop.f32.mrf.mxu0
    %227 = vmatprep.mubr.f32.mxu0 0.0
    %228 = vmatmul.mubr.f32.gmra.mxu0 %v56
    %v229 = vpop.f32.mrf.mxu0
    %v230 = vadd.f32 %v96, %v229
    %v231 = vpop.f32.mrf.mxu0
    %232 = vmatprep.mubr.f32.mxu0 0.0
    %233 = vmatmul.mubr.f32.gmra.mxu0 %v57
    %v234 = vpop.f32.mrf.mxu0
    %v235 = vadd.f32 %v96, %v234
    %v236 = vpop.f32.mrf.mxu0
    %237 = vmatprep.mubr.f32.mxu0 0.0
    %238 = vmatmul.mubr.f32.gmra.mxu0 %v58
    %v239 = vpop.f32.mrf.mxu0
    %v240 = vadd.f32 %v96, %v239
    %v241 = vpop.f32.mrf.mxu0
    %242 = vmatprep.mubr.f32.mxu0 0.0
    %243 = vmatmul.mubr.f32.gmra.mxu0 %v59
    %v244 = vpop.f32.mrf.mxu0
    %v245 = vadd.f32 %v96, %v244
    %v246 = vpop.f32.mrf.mxu0
    %247 = vmatprep.mubr.f32.mxu0 0.0
    %248 = vmatmul.mubr.f32.gmra.mxu0 %v60
    %v249 = vpop.f32.mrf.mxu0
    %v250 = vadd.f32 %v96, %v249
    %v251 = vpop.f32.mrf.mxu0
    %252 = vmatprep.mubr.f32.mxu0 0.0
    %253 = vmatmul.mubr.f32.gmra.mxu0 %v61
    %v254 = vpop.f32.mrf.mxu0
    %v255 = vadd.f32 %v96, %v254
    %v256 = vpop.f32.mrf.mxu0
    %257 = vmatprep.mubr.f32.mxu0 0.0
    %258 = vmatmul.mubr.f32.gmra.mxu0 %v62
    %v259 = vpop.f32.mrf.mxu0
    %v260 = vadd.f32 %v96, %v259
    %v261 = vpop.f32.mrf.mxu0
    %262 = vmatprep.mubr.f32.mxu0 0.0
    %263 = vmatmul.mubr.f32.gmra.mxu0 %v63
    %v264 = vpop.f32.mrf.mxu0
    %v265 = vadd.f32 %v96, %v264
    %v266 = vpop.f32.mrf.mxu0
    %267 = vmatprep.mubr.f32.mxu0 0.0
    %268 = vmatmul.mubr.f32.gmra.mxu0 %v64
    %v269 = vpop.f32.mrf.mxu0
    %v270 = vadd.f32 %v96, %v269
    %v271 = vpop.f32.mrf.mxu0
    %272 = vmatprep.mubr.f32.mxu0 0.0
    %273 = vmatmul.mubr.f32.gmra.mxu0 %v65
    %v274 = vpop.f32.mrf.mxu0
    %v275 = vadd.f32 %v96, %v274
    %v276 = vpop.f32.mrf.mxu0
    %277 = vmatprep.mubr.f32.mxu0 0.0
    %278 = vmatmul.mubr.f32.gmra.mxu0 %v66
    %v279 = vpop.f32.mrf.mxu0
    %v280 = vadd.f32 %v96, %v279
    %v281 = vpop.f32.mrf.mxu0
    %282 = vmatprep.mubr.f32.mxu0 0.0
    %283 = vmatmul.mubr.f32.gmra.mxu0 %v67
    %v284 = vpop.f32.mrf.mxu0
    %v285 = vadd.f32 %v96, %v284
    %v286 = vpop.f32.mrf.mxu0
    %287 = vmatprep.mubr.f32.mxu0 0.0
    %288 = vmatmul.mubr.f32.gmra.mxu0 %v68
    %v289 = vpop.f32.mrf.mxu0
    %v290 = vadd.f32 %v96, %v289
    %v291 = vpop.f32.mrf.mxu0
    %292 = vmatprep.mubr.f32.mxu0 0.0
    %293 = vmatmul.mubr.f32.gmra.mxu0 %v69
    %v294 = vpop.f32.mrf.mxu0
    %v295 = vadd.f32 %v96, %v294
    %v296 = vpop.f32.mrf.mxu0
    %297 = vmatprep.mubr.f32.mxu0 0.0
    %298 = vmatmul.mubr.f32.gmra.mxu0 %v70
    %v299 = vpop.f32.mrf.mxu0
    %v300 = vadd.f32 %v96, %v299
    %v301 = vpop.f32.mrf.mxu0
    %302 = vmatprep.mubr.f32.mxu0 0.0
    %303 = vmatmul.mubr.f32.gmra.mxu0 %v71
    %v304 = vpop.f32.mrf.mxu0
    %v305 = vadd.f32 %v96, %v304
    %v306 = vpop.f32.mrf.mxu0
    %307 = vmatprep.mubr.f32.mxu0 0.0
    %308 = vmatmul.mubr.f32.gmra.mxu0 %v72
    %v309 = vpop.f32.mrf.mxu0
    %v310 = vadd.f32 %v96, %v309
    %v311 = vpop.f32.mrf.mxu0
    %312 = vmatprep.mubr.f32.mxu0 0.0
    %313 = vmatmul.mubr.f32.gmra.mxu0 %v73
    %v314 = vpop.f32.mrf.mxu0
    %v315 = vadd.f32 %v96, %v314
    %v316 = vpop.f32.mrf.mxu0
    %317 = vmatprep.mubr.f32.mxu0 0.0
    %318 = vmatmul.mubr.f32.gmra.mxu0 %v74
    %v319 = vpop.f32.mrf.mxu0
    %v320 = vadd.f32 %v96, %v319
    %v321 = vpop.f32.mrf.mxu0
    %322 = vdwg.mxu0
    %v323 = vmul.f32 %v43, %v165
    %v324 = vmul.f32 %v44, %v170
    %v325 = vmul.f32 %v45, %v175
    %v326 = vmul.f32 %v46, %v180
    %v327 = vmul.f32 %v47, %v185
    %v328 = vmul.f32 %v48, %v190
    %v329 = vmul.f32 %v49, %v195
    %v330 = vmul.f32 %v50, %v200
    %v331 = vmul.f32 %v51, %v205
    %v332 = vmul.f32 %v52, %v210
    %v333 = vmul.f32 %v53, %v215
    %v334 = vmul.f32 %v54, %v220
    %v335 = vmul.f32 %v55, %v225
    %v336 = vmul.f32 %v56, %v230
    %v337 = vmul.f32 %v57, %v235
    %v338 = vmul.f32 %v58, %v240
    %v339 = vmul.f32 %v59, %v245
    %v340 = vmul.f32 %v60, %v250
    %v341 = vmul.f32 %v61, %v255
    %v342 = vmul.f32 %v62, %v260
    %v343 = vmul.f32 %v63, %v265
    %v344 = vmul.f32 %v64, %v270
    %v345 = vmul.f32 %v65, %v275
    %v346 = vmul.f32 %v66, %v280
    %v347 = vmul.f32 %v67, %v285
    %v348 = vmul.f32 %v68, %v290
    %v349 = vmul.f32 %v69, %v295
    %v350 = vmul.f32 %v70, %v300
    %v351 = vmul.f32 %v71, %v305
    %v352 = vmul.f32 %v72, %v310
    %v353 = vmul.f32 %v73, %v315
    %v354 = vmul.f32 %v74, %v320
    %355 = vxpose.xlu0.b32.start [1/16] %v323, 128
    %356 = vxpose.xlu0.b32.cont [2/16] %v324, 128
    %357 = vxpose.xlu0.b32.cont [3/16] %v325, 128
    %358 = vxpose.xlu0.b32.cont [4/16] %v326, 128
    %359 = vxpose.xlu0.b32.cont [5/16] %v327, 128
    %360 = vxpose.xlu0.b32.cont [6/16] %v328, 128
    %361 = vxpose.xlu0.b32.cont [7/16] %v329, 128
    %362 = vxpose.xlu0.b32.cont [8/16] %v330, 128
    %363 = vxpose.xlu0.b32.cont [9/16] %v331, 128
    %364 = vxpose.xlu0.b32.cont [10/16] %v332, 128
    %365 = vxpose.xlu0.b32.cont [11/16] %v333, 128
    %366 = vxpose.xlu0.b32.cont [12/16] %v334, 128
    %367 = vxpose.xlu0.b32.cont [13/16] %v335, 128
    %368 = vxpose.xlu0.b32.cont [14/16] %v336, 128
    %369 = vxpose.xlu0.b32.cont [15/16] %v337, 128
    %370 = vxpose.xlu0.b32.end [16/16] %v338, 128
    %v371 = vpop.trf.xlu0
    %v372 = vpop.trf.xlu0
    %v373 = vpop.trf.xlu0
    %v374 = vpop.trf.xlu0
    %v375 = vpop.trf.xlu0
    %v376 = vpop.trf.xlu0
    %v377 = vpop.trf.xlu0
    %v378 = vpop.trf.xlu0
    %v379 = vpop.trf.xlu0
    %v380 = vpop.trf.xlu0
    %v381 = vpop.trf.xlu0
    %v382 = vpop.trf.xlu0
    %v383 = vpop.trf.xlu0
    %v384 = vpop.trf.xlu0
    %v385 = vpop.trf.xlu0
    %v386 = vpop.trf.xlu0
    %387 = vxpose.xlu0.b32.start [1/16] %v339, 128
    %388 = vxpose.xlu0.b32.cont [2/16] %v340, 128
    %389 = vxpose.xlu0.b32.cont [3/16] %v341, 128
    %390 = vxpose.xlu0.b32.cont [4/16] %v342, 128
    %391 = vxpose.xlu0.b32.cont [5/16] %v343, 128
    %392 = vxpose.xlu0.b32.cont [6/16] %v344, 128
    %393 = vxpose.xlu0.b32.cont [7/16] %v345, 128
    %394 = vxpose.xlu0.b32.cont [8/16] %v346, 128
    %395 = vxpose.xlu0.b32.cont [9/16] %v347, 128
    %396 = vxpose.xlu0.b32.cont [10/16] %v348, 128
    %397 = vxpose.xlu0.b32.cont [11/16] %v349, 128
    %398 = vxpose.xlu0.b32.cont [12/16] %v350, 128
    %399 = vxpose.xlu0.b32.cont [13/16] %v351, 128
    %400 = vxpose.xlu0.b32.cont [14/16] %v352, 128
    %401 = vxpose.xlu0.b32.cont [15/16] %v353, 128
    %402 = vxpose.xlu0.b32.end [16/16] %v354, 128
    %v403 = vpop.trf.xlu0
    %v404 = vpop.trf.xlu0
    %v405 = vpop.trf.xlu0
    %v406 = vpop.trf.xlu0
    %v407 = vpop.trf.xlu0
    %v408 = vpop.trf.xlu0
    %v409 = vpop.trf.xlu0
    %v410 = vpop.trf.xlu0
    %v411 = vpop.trf.xlu0
    %v412 = vpop.trf.xlu0
    %v413 = vpop.trf.xlu0
    %v414 = vpop.trf.xlu0
    %v415 = vpop.trf.xlu0
    %v416 = vpop.trf.xlu0
    %v417 = vpop.trf.xlu0
    %v418 = vpop.trf.xlu0
    %v419 = vadd.f32 %v371, %v372
    %v420 = vadd.f32 %v419, %v373
    %v421 = vadd.f32 %v420, %v374
    %v422 = vadd.f32 %v421, %v375
    %v423 = vadd.f32 %v422, %v376
    %v424 = vadd.f32 %v423, %v377
    %v425 = vadd.f32 %v424, %v378
    %v426 = vadd.f32 %v425, %v379
    %v427 = vadd.f32 %v426, %v380
    %v428 = vadd.f32 %v427, %v381
    %v429 = vadd.f32 %v428, %v382
    %v430 = vadd.f32 %v429, %v383
    %v431 = vadd.f32 %v430, %v384
    %v432 = vadd.f32 %v431, %v385
    %v433 = vadd.f32 %v432, %v386
    %v434 = vrot.slane %v433, 4
    %v435 = vadd.f32 %v433, %v434
    %v436 = vrot.slane %v435, 2
    %v437 = vadd.f32 %v435, %v436
    %v438 = vrot.slane %v437, 1
    %v439 = vadd.f32 %v437, %v438
    %v440 = vadd.f32 %v403, %v404
    %v441 = vadd.f32 %v440, %v405
    %v442 = vadd.f32 %v441, %v406
    %v443 = vadd.f32 %v442, %v407
    %v444 = vadd.f32 %v443, %v408
    %v445 = vadd.f32 %v444, %v409
    %v446 = vadd.f32 %v445, %v410
    %v447 = vadd.f32 %v446, %v411
    %v448 = vadd.f32 %v447, %v412
    %v449 = vadd.f32 %v448, %v413
    %v450 = vadd.f32 %v449, %v414
    %v451 = vadd.f32 %v450, %v415
    %v452 = vadd.f32 %v451, %v416
    %v453 = vadd.f32 %v452, %v417
    %v454 = vadd.f32 %v453, %v418
    %v455 = vrot.slane %v454, 4
    %v456 = vadd.f32 %v454, %v455
    %v457 = vrot.slane %v456, 2
    %v458 = vadd.f32 %v456, %v457
    %v459 = vrot.slane %v458, 1
    %v460 = vadd.f32 %v458, %v459
    %v463 = vcombine.low %v439, %v460
    %v465 = vunpack.c.l.s4 1966171168
    %v466 = vunpack.c.0.s8 %v465
    %v467 = vlaneseq
    %v468 = vshrl.u32 %v467, 7
    %v469 = vsub.s32 %v466, %v468
    %v470 = vrot.slane %v463, %v469
    %v472 = vunpack.c.l.s4 1966171168
    %v473 = vunpack.c.0.s8 %v472
    %v474 = vlaneseq
    %v475 = vshrl.u32 %v474, 7
    %v476 = vsub.s32 %v473, %v475
    %v477 = vrot.slane %v470, %v476
    %v479 = vlaneseq
    %vm480 = vcmp.ge.s32.totalorder %v479, 0
    %vm481 = vcmp.lt.s32.totalorder %v479, 256
    %vm482 = vmand %vm480, %vm481
    %483 = vst.msk [vmem:[#allocation7] sm:$0x3] %vm482, %v477
    // Predicated region
    $region22: #{tpu_custom_call.1} parent=1 // pred_check
      _
    $region23: #{tpu_custom_call.1} parent=1 // pred_check_branch
      %485 = sbr.rel (0) target = $region25
    $region24: #{tpu_custom_call.1} parent=1 // pred_region
      %s487 = ssub.s32 32, 32
      %488 = vsyncadd [#allocation4], %s487
      %s490 = sshll.u32 [#allocation7], 4
      %s491 = int_to_ptr.vmem [resolvable:$true] %s490
      %493 = dma.vmem_to_hbm [thread:$0]  %s491, 32, %s3, [#allocation4]
    $region25: #{tpu_custom_call.1} parent=1 // pred_fallthru
      _
    // Predicated region
    $region26: #{tpu_custom_call.1} parent=1 // pred_check
      _
    $region27: #{tpu_custom_call.1} parent=1 // pred_check_branch
      %495 = sbr.rel (0) target = $region29
    $region28: #{tpu_custom_call.1} parent=1 // pred_region
      %496 = dma.done [#allocation4], 32
    $region29: #{tpu_custom_call.1} parent=1 // pred_fallthru
      _
    %497 = vsyncpa [#allocation3], 1
    %498 = vsyncpa [#allocation6], 1
    %499 = vsyncpa [#allocation4], 1

</llo_original>
